<compile_context>
chip_gen: v5e
topology: v5e:2x2
jax: 0.10.0
libtpu: 0.0.40
codegen_flags: <defaults>
</compile_context>

<pallas_src>
import jax
import jax.numpy as jnp
import numpy as np
from jax.experimental import pallas as pl
from jax.experimental.pallas import tpu as pltpu


def _pick_group_size(n_head: int, head_dim: int) -> int:
    """Largest divisor of n_head whose grouped width G*head_dim stays <= 256."""
    best = 1
    for g in range(1, n_head + 1):
        if n_head % g == 0 and g * head_dim <= 256:
            best = g
    return best


def _estimate_vmem_bytes(itemsize, tq, t_kv, d, group, head_dim, has_mask, return_qk):
    ghd = group * head_dim
    est = 0
    est += 2 * tq * d * itemsize            # q-tile input (double buffered)
    est += 2 * t_kv * d * itemsize          # kv source (resident, 2 buffers)
    if has_mask:
        est += 2 * tq * t_kv * 4            # additive mask
    est += 2 * 4 * d * ghd * itemsize       # wq, wk, wv, wo group slices
    est += 2 * tq * d * itemsize            # out tile
    if return_qk:
        est += 2 * group * tq * t_kv * 4    # qk logits tile
    est += tq * d * 4                       # f32 accumulator scratch
    est += (2 * t_kv + tq) * ghd * 4        # q/k/v f32 projection temporaries
    est += 3 * tq * t_kv * 4                # score / softmax temporaries
    return est


def _make_mha_kernel(*, has_mask, causal, return_qk, group, head_dim, tq, t_kv,
                     approx_softmax):
    """Build a kernel specialized on the static configuration."""

    def kernel(*refs):
        it = iter(refs)
        x_q_ref = next(it)                            # (1, tq, D)    query rows of x
        x_kv_ref = next(it)                           # (1, t_kv, D)  kv source, resident per b
        mask_ref = next(it) if has_mask else None     # (tq, t_kv) f32 additive mask
        wq_ref = next(it)                             # (1, D, G*hd)  scale folded
        bq_ref = next(it)                             # (1, 1, G*hd)
        wk_ref = next(it)                             # (1, D, G*hd)
        wv_ref = next(it)                             # (1, D, G*hd)
        bv_ref = next(it)                             # (1, 1, G*hd)
        wo_ref = next(it)                             # (1, G*hd, D)
        bo_ref = next(it)                             # (1, D)
        out_ref = next(it)                            # (1, tq, D)
        qk_ref = next(it) if return_qk else None      # (1, G, tq, t_kv) f32
        acc_ref = next(it)                            # (tq, D) f32 scratch

        qi = pl.program_id(1)
        g = pl.program_id(2)
        n_groups = pl.num_programs(2)

        x_q = x_q_ref[0]
        x_kv = x_kv_ref[0]
        in_dtype = x_q.dtype

        # Projections: native (M, K) @ (K, N) MXU feeds, f32 accumulation.
        q = jnp.dot(x_q, wq_ref[0], preferred_element_type=jnp.float32) + bq_ref[0]
        k = jnp.dot(x_kv, wk_ref[0], preferred_element_type=jnp.float32)
        v = jnp.dot(x_kv, wv_ref[0], preferred_element_type=jnp.float32) + bv_ref[0]
        q = q.astype(in_dtype)
        k = k.astype(in_dtype)
        v = v.astype(in_dtype)

        # Additive mask, shared by every head in the group (computed/loaded once).
        if has_mask:
            add_mask = mask_ref[...]
        elif causal:
            row = qi * tq + jax.lax.broadcasted_iota(jnp.int32, (tq, t_kv), 0)
            col = jax.lax.broadcasted_iota(jnp.int32, (tq, t_kv), 1)
            keep = col <= row

        wv_parts = []
        for h in range(group):                        # static unroll over the head group
            sl = slice(h * head_dim, (h + 1) * head_dim)
            s = jax.lax.dot_general(q[:, sl], k[:, sl],
                                    (((1,), (1,)), ((), ())),
                                    preferred_element_type=jnp.float32)   # (tq, t_kv)
            if has_mask:
                s = s + add_mask
            elif causal:
                s = jnp.where(keep, s, -jnp.inf)
            if qk_ref is not None:
                qk_ref[0, h] = s                      # pre-softmax logits (f32)
            if approx_softmax:
                m = jnp.max(s, axis=-1, keepdims=True)
                p = jnp.exp(s - m)
                w = p * pl.reciprocal(jnp.sum(p, axis=-1, keepdims=True), approx=True)
            else:
                w = jax.nn.softmax(s, axis=-1)        # f32 softmax
            wv_parts.append(jnp.dot(w.astype(in_dtype), v[:, sl],
                                    preferred_element_type=jnp.float32))

        wv_cat = jnp.concatenate(wv_parts, axis=-1).astype(in_dtype)       # (tq, G*hd)

        @pl.when(g == 0)
        def _():
            acc_ref[...] = jnp.broadcast_to(bo_ref[...], acc_ref.shape).astype(jnp.float32)

        # Output projection: lane-dense contraction over the full group width.
        acc_ref[...] += jnp.dot(wv_cat, wo_ref[0], preferred_element_type=jnp.float32)

        @pl.when(g == n_groups - 1)
        def _():
            out_ref[0] = acc_ref[...].astype(out_ref.dtype)

    return kernel


def multi_head_attention(x, params, n_head, xa=None, mask=None, *, causal=False,
                         tq=None, group_size=None, return_qk=True,
                         approx_softmax=False, vmem_limit_bytes=None):
    """Whisper MultiHeadAttention forward.

    Returns (out, qk) like the PyTorch module:
      out: (B, S, D) in x.dtype
      qk : (B, H, S, Tk) float32 pre-softmax logits (mask already added), or
           None when return_qk=False (drops the dominant HBM writeback).
    """
    B, S, D = x.shape
    assert D % n_head == 0
    hd = D // n_head
    dtype = x.dtype

    kv_src = x if xa is None else xa
    Bk, Tk, Dk = kv_src.shape
    assert Bk == B and Dk == D

    if group_size is None:
        group_size = _pick_group_size(n_head, hd)
    assert n_head % group_size == 0
    G = group_size
    ghd = G * hd
    n_groups = n_head // G

    if tq is None:
        tq = min(S, 256)
    tq = min(int(tq), S)
    if tq < S:
        tq = max(8, (tq // 8) * 8)          # sublane-aligned q tiles
    n_qtiles = pl.cdiv(S, tq)

    has_mask = mask is not None
    causal_in_kernel = bool(causal) and not has_mask

    # --- Wrapper-side weight preparation (one-time; no in-kernel relayouts). ---
    f32 = jnp.float32
    scale2 = float(hd) ** -0.5              # (hd**-0.25 on q) * (hd**-0.25 on k)
    wq = (params["wq"].astype(f32) * scale2).T.reshape(D, n_groups, ghd)
    wq = wq.transpose(1, 0, 2).astype(dtype)                           # (n_groups, D, G*hd)
    bq = (params["bq"].astype(f32) * scale2).reshape(n_groups, 1, ghd).astype(dtype)
    wk = params["wk"].T.reshape(D, n_groups, ghd).transpose(1, 0, 2).astype(dtype)
    wv = params["wv"].T.reshape(D, n_groups, ghd).transpose(1, 0, 2).astype(dtype)
    bv = params["bv"].reshape(n_groups, 1, ghd).astype(dtype)
    wo = params["wo"].T.reshape(n_groups, ghd, D).astype(dtype)        # rows = head features
    bo = params["bo"].reshape(1, D).astype(dtype)

    group_map = lambda b, qi, g: (g, 0, 0)
    in_specs = [
        pl.BlockSpec((1, tq, D), lambda b, qi, g: (b, qi, 0)),         # query rows of x
        pl.BlockSpec((1, Tk, D), lambda b, qi, g: (b, 0, 0)),          # kv source, resident
    ]
    inputs = [x, kv_src]
    if has_mask:
        assert Tk == S, "additive mask requires self-attention (Tk == S)"
        mask_arr = jnp.asarray(mask)[:S, :S].astype(jnp.float32)
        in_specs.append(pl.BlockSpec((tq, Tk), lambda b, qi, g: (qi, 0)))
        inputs.append(mask_arr)
    in_specs += [
        pl.BlockSpec((1, D, ghd), group_map),        # wq (scale folded)
        pl.BlockSpec((1, 1, ghd), group_map),        # bq (scale folded)
        pl.BlockSpec((1, D, ghd), group_map),        # wk (no bias)
        pl.BlockSpec((1, D, ghd), group_map),        # wv
        pl.BlockSpec((1, 1, ghd), group_map),        # bv
        pl.BlockSpec((1, ghd, D), group_map),        # wo.T group slice
        pl.BlockSpec((1, D), lambda b, qi, g: (0, 0)),                 # bo (resident)
    ]
    inputs += [wq, bq, wk, wv, bv, wo, bo]

    out_spec = pl.BlockSpec((1, tq, D), lambda b, qi, g: (b, qi, 0))
    if return_qk:
        out_shape = (jax.ShapeDtypeStruct((B, S, D), dtype),
                     jax.ShapeDtypeStruct((B, n_head, S, Tk), jnp.float32))
        out_specs = (out_spec,
                     pl.BlockSpec((1, G, tq, Tk), lambda b, qi, g: (b, g, qi, 0)))
    else:
        out_shape = jax.ShapeDtypeStruct((B, S, D), dtype)
        out_specs = out_spec

    if vmem_limit_bytes is None:
        est = _estimate_vmem_bytes(jnp.dtype(dtype).itemsize, tq, Tk, D, G, hd,
                                   has_mask, return_qk)
        vmem_limit_bytes = int(min(max(int(est * 1.3), 32 << 20), 112 << 20))

    kernel = _make_mha_kernel(has_mask=has_mask, causal=causal_in_kernel,
                              return_qk=return_qk, group=G, head_dim=hd, tq=tq,
                              t_kv=Tk, approx_softmax=approx_softmax)

    result = pl.pallas_call(
        kernel,
        out_shape=out_shape,
        grid=(B, n_qtiles, n_groups),
        in_specs=in_specs,
        out_specs=out_specs,
        scratch_shapes=[pltpu.VMEM((tq, D), jnp.float32)],
        compiler_params=pltpu.CompilerParams(
            dimension_semantics=("parallel", "parallel", "arbitrary"),
            vmem_limit_bytes=vmem_limit_bytes),
    )(*inputs)

    if return_qk:
        out, qk = result
        return out, qk
    return result, None


def reference_mha(x, params, n_head, xa=None, mask=None):
    """Pure-JAX reference mirroring the PyTorch module (for verification)."""
    B, S, D = x.shape
    hd = D // n_head
    scale = float(hd) ** -0.25
    kv = x if xa is None else xa
    Tk = kv.shape[1]
    q = x @ params["wq"].T + params["bq"]
    k = kv @ params["wk"].T
    v = kv @ params["wv"].T + params["bv"]
    qh = q.reshape(B, S, n_head, hd).transpose(0, 2, 1, 3) * scale
    kh = k.reshape(B, Tk, n_head, hd).transpose(0, 2, 3, 1) * scale
    vh = v.reshape(B, Tk, n_head, hd).transpose(0, 2, 1, 3)
    qk = jnp.einsum("bhtd,bhds->bhts", qh, kh)
    if mask is not None:
        qk = qk + mask[:S, :S]
    qk = qk.astype(jnp.float32)
    w = jax.nn.softmax(qk, axis=-1).astype(x.dtype)
    wv = jnp.einsum("bhts,bhsd->bhtd", w, vh)
    wv = wv.transpose(0, 2, 1, 3).reshape(B, S, D)
    out = wv @ params["wo"].T + params["bo"]
    return out, qk


# TODO(synk): kv_cache dict (keyed by nn.Module instances) not implemented; pass
# xa (cross-attention source) instead — the kernel itself is identical.

if __name__ == "__main__":
    B, S, n_state, n_head = 2, 16, 32, 4

    key = jax.random.PRNGKey(0)
    keys = jax.random.split(key, 9)
    params = {
        "wq": 0.02 * jax.random.normal(keys[0], (n_state, n_state), jnp.float32),
        "bq": 0.02 * jax.random.normal(keys[1], (n_state,), jnp.float32),
        "wk": 0.02 * jax.random.normal(keys[2], (n_state, n_state), jnp.float32),
        "wv": 0.02 * jax.random.normal(keys[3], (n_state, n_state), jnp.float32),
        "bv": 0.02 * jax.random.normal(keys[4], (n_state,), jnp.float32),
        "wo": 0.02 * jax.random.normal(keys[5], (n_state, n_state), jnp.float32),
        "bo": 0.02 * jax.random.normal(keys[6], (n_state,), jnp.float32),
    }
    x = jax.random.normal(keys[7], (B, S, n_state), jnp.float32)
    xa = jax.random.normal(keys[8], (B, 24, n_state), jnp.float32)

    def check(actual, expected, rtol=1e-5, atol=1e-5):
        np.testing.assert_allclose(np.asarray(actual), np.asarray(expected),
                                   rtol=rtol, atol=atol)

    # 1) encoder-style self-attention (no mask); exercises q-tiling + head grouping.
    out, qk = multi_head_attention(x, params, n_head, tq=8, group_size=2)
    jax.block_until_ready(out); jax.block_until_ready(qk)
    out_r, qk_r = reference_mha(x, params, n_head)
    assert out.shape == (B, S, n_state) and qk.shape == (B, n_head, S, S)
    check(out, out_r); check(qk, qk_r)

    # 2) decoder-style self-attention with an explicit additive causal mask.
    causal_mask = jnp.where(jnp.triu(jnp.ones((S, S), dtype=bool), k=1),
                            -jnp.inf, 0.0).astype(jnp.float32)
    out_m, qk_m = multi_head_attention(x, params, n_head, mask=causal_mask,
                                       tq=8, group_size=2)
    jax.block_until_ready(out_m)
    out_mr, qk_mr = reference_mha(x, params, n_head, mask=causal_mask)
    check(out_m, out_mr); check(qk_m, qk_mr)

    # 3) causal mask generated in-kernel (no (T,T) f32 mask DMA).
    out_c, qk_c = multi_head_attention(x, params, n_head, causal=True)
    jax.block_until_ready(out_c)
    check(out_c, out_mr); check(qk_c, qk_mr)

    # 4) cross-attention (xa provided, kv length != query length).
    out_x, qk_x = multi_head_attention(x, params, n_head, xa=xa, tq=8)
    jax.block_until_ready(out_x)
    out_xr, qk_xr = reference_mha(x, params, n_head, xa=xa)
    assert qk_x.shape == (B, n_head, S, xa.shape[1])
    check(out_x, out_xr); check(qk_x, qk_xr)

    # 5) logits output dropped (no qk HBM writeback) + EUP approx reciprocal.
    out_f, qk_f = multi_head_attention(x, params, n_head, return_qk=False,
                                       approx_softmax=True, tq=8, group_size=2)
    jax.block_until_ready(out_f)
    assert qk_f is None
    check(out_f, out_r, rtol=2e-3, atol=2e-3)

    print("KERNEL_OK")
</pallas_src>

<mosaic_0001>
module attributes {stable_mosaic.version = 11 : i64} {
  func.func @kernel(%arg0: i32, %arg1: i32, %arg2: i32, %arg3: memref<1x8x32xf32, #tpu.memory_space<vmem>>, %arg4: memref<1x16x32xf32, #tpu.memory_space<vmem>>, %arg5: memref<1x32x16xf32, #tpu.memory_space<vmem>>, %arg6: memref<1x1x16xf32, #tpu.memory_space<vmem>>, %arg7: memref<1x32x16xf32, #tpu.memory_space<vmem>>, %arg8: memref<1x32x16xf32, #tpu.memory_space<vmem>>, %arg9: memref<1x1x16xf32, #tpu.memory_space<vmem>>, %arg10: memref<1x16x32xf32, #tpu.memory_space<vmem>>, %arg11: memref<1x32xf32, #tpu.memory_space<vmem>>, %arg12: memref<1x8x32xf32, #tpu.memory_space<vmem>>, %arg13: memref<1x2x8x16xf32, #tpu.memory_space<vmem>>, %arg14: memref<8x32xf32, #tpu.memory_space<vmem>>) attributes {dimension_semantics = [#tpu.dimension_semantics<parallel>, #tpu.dimension_semantics<parallel>, #tpu.dimension_semantics<arbitrary>], iteration_bounds = array<i64: 2, 2, 2>, scalar_prefetch = 0 : i64, scratch_operands = 1 : i64, tpu.core_type = #tpu.core_type<tc>, window_params = [{transform_indices = @transform_0, window_bounds = array<i64: 1, 8, 32>}, {transform_indices = @transform_1, window_bounds = array<i64: 1, 16, 32>}, {transform_indices = @transform_2, window_bounds = array<i64: 1, 32, 16>}, {transform_indices = @transform_3, window_bounds = array<i64: 1, 1, 16>}, {transform_indices = @transform_4, window_bounds = array<i64: 1, 32, 16>}, {transform_indices = @transform_5, window_bounds = array<i64: 1, 32, 16>}, {transform_indices = @transform_6, window_bounds = array<i64: 1, 1, 16>}, {transform_indices = @transform_7, window_bounds = array<i64: 1, 16, 32>}, {pipeline_mode = #tpu.pipeline_mode<synchronous>, transform_indices = @transform_8, window_bounds = array<i64: 1, 32>}, {transform_indices = @transform_9, window_bounds = array<i64: 1, 8, 32>}, {transform_indices = @transform_10, window_bounds = array<i64: 1, 2, 8, 16>}]} {
    %c0 = arith.constant 0 : index
    %c0_0 = arith.constant 0 : index
    %c0_1 = arith.constant 0 : index
    %0 = vector.load %arg3[%c0, %c0_0, %c0_1] : memref<1x8x32xf32, #tpu.memory_space<vmem>>, vector<1x8x32xf32>
    %1 = vector.shape_cast %0 : vector<1x8x32xf32> to vector<8x32xf32>
    %c0_2 = arith.constant 0 : index
    %c0_3 = arith.constant 0 : index
    %c0_4 = arith.constant 0 : index
    %2 = vector.load %arg4[%c0_2, %c0_3, %c0_4] : memref<1x16x32xf32, #tpu.memory_space<vmem>>, vector<1x16x32xf32>
    %3 = vector.shape_cast %2 : vector<1x16x32xf32> to vector<16x32xf32>
    %c0_5 = arith.constant 0 : index
    %c0_6 = arith.constant 0 : index
    %c0_7 = arith.constant 0 : index
    %4 = vector.load %arg5[%c0_5, %c0_6, %c0_7] : memref<1x32x16xf32, #tpu.memory_space<vmem>>, vector<1x32x16xf32>
    %5 = vector.shape_cast %4 : vector<1x32x16xf32> to vector<32x16xf32>
    %cst = arith.constant dense<0.000000e+00> : vector<8x16xf32>
    %6 = tpu.matmul %1, %5, %cst {dimension_numbers = #tpu.dot_dimension_numbers<[1], [0], [0], [1], [0, 0, 1, 1], [], []>} : vector<8x32xf32>, vector<32x16xf32>, vector<8x16xf32> -> vector<8x16xf32>
    %c0_8 = arith.constant 0 : index
    %c0_9 = arith.constant 0 : index
    %c0_10 = arith.constant 0 : index
    %7 = vector.load %arg6[%c0_8, %c0_9, %c0_10] : memref<1x1x16xf32, #tpu.memory_space<vmem>>, vector<1x1x16xf32>
    %8 = vector.shape_cast %7 : vector<1x1x16xf32> to vector<1x16xf32>
    %9 = vector.broadcast %8 : vector<1x16xf32> to vector<8x16xf32>
    %10 = arith.addf %6, %9 : vector<8x16xf32>
    %c0_11 = arith.constant 0 : index
    %c0_12 = arith.constant 0 : index
    %c0_13 = arith.constant 0 : index
    %11 = vector.load %arg7[%c0_11, %c0_12, %c0_13] : memref<1x32x16xf32, #tpu.memory_space<vmem>>, vector<1x32x16xf32>
    %12 = vector.shape_cast %11 : vector<1x32x16xf32> to vector<32x16xf32>
    %cst_14 = arith.constant dense<0.000000e+00> : vector<16x16xf32>
    %13 = tpu.matmul %3, %12, %cst_14 {dimension_numbers = #tpu.dot_dimension_numbers<[1], [0], [0], [1], [0, 0, 1, 1], [], []>} : vector<16x32xf32>, vector<32x16xf32>, vector<16x16xf32> -> vector<16x16xf32>
    %c0_15 = arith.constant 0 : index
    %c0_16 = arith.constant 0 : index
    %c0_17 = arith.constant 0 : index
    %14 = vector.load %arg8[%c0_15, %c0_16, %c0_17] : memref<1x32x16xf32, #tpu.memory_space<vmem>>, vector<1x32x16xf32>
    %15 = vector.shape_cast %14 : vector<1x32x16xf32> to vector<32x16xf32>
    %cst_18 = arith.constant dense<0.000000e+00> : vector<16x16xf32>
    %16 = tpu.matmul %3, %15, %cst_18 {dimension_numbers = #tpu.dot_dimension_numbers<[1], [0], [0], [1], [0, 0, 1, 1], [], []>} : vector<16x32xf32>, vector<32x16xf32>, vector<16x16xf32> -> vector<16x16xf32>
    %c0_19 = arith.constant 0 : index
    %c0_20 = arith.constant 0 : index
    %c0_21 = arith.constant 0 : index
    %17 = vector.load %arg9[%c0_19, %c0_20, %c0_21] : memref<1x1x16xf32, #tpu.memory_space<vmem>>, vector<1x1x16xf32>
    %18 = vector.shape_cast %17 : vector<1x1x16xf32> to vector<1x16xf32>
    %19 = vector.broadcast %18 : vector<1x16xf32> to vector<16x16xf32>
    %20 = arith.addf %16, %19 : vector<16x16xf32>
    %21 = vector.extract_strided_slice %10 {offsets = [0, 0], sizes = [8, 8], strides = [1, 1]} : vector<8x16xf32> to vector<8x8xf32>
    %22 = vector.extract_strided_slice %13 {offsets = [0, 0], sizes = [16, 8], strides = [1, 1]} : vector<16x16xf32> to vector<16x8xf32>
    %cst_22 = arith.constant dense<0.000000e+00> : vector<8x16xf32>
    %23 = tpu.matmul %21, %22, %cst_22 {dimension_numbers = #tpu.dot_dimension_numbers<[1], [1], [0], [0], [0, 0, 1, 0], [], []>} : vector<8x8xf32>, vector<16x8xf32>, vector<8x16xf32> -> vector<8x16xf32>
    %c0_23 = arith.constant 0 : index
    %c0_24 = arith.constant 0 : index
    %c0_25 = arith.constant 0 : index
    %c0_26 = arith.constant 0 : index
    %24 = vector.load %arg13[%c0_23, %c0_24, %c0_25, %c0_26] : memref<1x2x8x16xf32, #tpu.memory_space<vmem>>, vector<1x1x8x16xf32>
    %25 = vector.shape_cast %24 : vector<1x1x8x16xf32> to vector<8x16xf32>
    %26 = vector.shape_cast %23 : vector<8x16xf32> to vector<1x1x8x16xf32>
    tpu.vector_store %arg13[%c0_23, %c0_24, %c0_25, %c0_26], %26 {strides = array<i32>} : memref<1x2x8x16xf32, #tpu.memory_space<vmem>>, vector<1x1x8x16xf32>,
    %cst_27 = arith.constant dense<0xFF800000> : vector<8xf32>
    %27 = vector.multi_reduction <maximumf>, %23, %cst_27 [1] : vector<8x16xf32> to vector<8xf32>
    %cst_28 = arith.constant 0xFF800000 : f32
    %28 = vector.broadcast %cst_28 : f32 to vector<8xf32>
    %29 = arith.maximumf %28, %27 : vector<8xf32>
    %30 = vector.shape_cast %29 : vector<8xf32> to vector<8x1xf32>
    %31 = vector.broadcast %30 : vector<8x1xf32> to vector<8x16xf32>
    %32 = arith.subf %23, %31 : vector<8x16xf32>
    %33 = math.exp %32 : vector<8x16xf32>
    %cst_29 = arith.constant dense<0.000000e+00> : vector<8xf32>
    %34 = vector.multi_reduction <add>, %33, %cst_29 [1] : vector<8x16xf32> to vector<8xf32>
    %35 = vector.shape_cast %34 : vector<8xf32> to vector<8x1xf32>
    %36 = vector.broadcast %35 : vector<8x1xf32> to vector<8x16xf32>
    %37 = arith.divf %33, %36 : vector<8x16xf32>
    %38 = vector.extract_strided_slice %20 {offsets = [0, 0], sizes = [16, 8], strides = [1, 1]} : vector<16x16xf32> to vector<16x8xf32>
    %cst_30 = arith.constant dense<0.000000e+00> : vector<8x8xf32>
    %39 = tpu.matmul %37, %38, %cst_30 {dimension_numbers = #tpu.dot_dimension_numbers<[1], [0], [0], [1], [0, 0, 1, 1], [], []>} : vector<8x16xf32>, vector<16x8xf32>, vector<8x8xf32> -> vector<8x8xf32>
    %40 = vector.extract_strided_slice %10 {offsets = [0, 8], sizes = [8, 8], strides = [1, 1]} : vector<8x16xf32> to vector<8x8xf32>
    %41 = vector.extract_strided_slice %13 {offsets = [0, 8], sizes = [16, 8], strides = [1, 1]} : vector<16x16xf32> to vector<16x8xf32>
    %cst_31 = arith.constant dense<0.000000e+00> : vector<8x16xf32>
    %42 = tpu.matmul %40, %41, %cst_31 {dimension_numbers = #tpu.dot_dimension_numbers<[1], [1], [0], [0], [0, 0, 1, 0], [], []>} : vector<8x8xf32>, vector<16x8xf32>, vector<8x16xf32> -> vector<8x16xf32>
    %c0_32 = arith.constant 0 : index
    %c1 = arith.constant 1 : index
    %c0_33 = arith.constant 0 : index
    %c0_34 = arith.constant 0 : index
    %43 = vector.load %arg13[%c0_32, %c1, %c0_33, %c0_34] : memref<1x2x8x16xf32, #tpu.memory_space<vmem>>, vector<1x1x8x16xf32>
    %44 = vector.shape_cast %43 : vector<1x1x8x16xf32> to vector<8x16xf32>
    %45 = vector.shape_cast %42 : vector<8x16xf32> to vector<1x1x8x16xf32>
    tpu.vector_store %arg13[%c0_32, %c1, %c0_33, %c0_34], %45 {strides = array<i32>} : memref<1x2x8x16xf32, #tpu.memory_space<vmem>>, vector<1x1x8x16xf32>,
    %cst_35 = arith.constant dense<0xFF800000> : vector<8xf32>
    %46 = vector.multi_reduction <maximumf>, %42, %cst_35 [1] : vector<8x16xf32> to vector<8xf32>
    %cst_36 = arith.constant 0xFF800000 : f32
    %47 = vector.broadcast %cst_36 : f32 to vector<8xf32>
    %48 = arith.maximumf %47, %46 : vector<8xf32>
    %49 = vector.shape_cast %48 : vector<8xf32> to vector<8x1xf32>
    %50 = vector.broadcast %49 : vector<8x1xf32> to vector<8x16xf32>
    %51 = arith.subf %42, %50 : vector<8x16xf32>
    %52 = math.exp %51 : vector<8x16xf32>
    %cst_37 = arith.constant dense<0.000000e+00> : vector<8xf32>
    %53 = vector.multi_reduction <add>, %52, %cst_37 [1] : vector<8x16xf32> to vector<8xf32>
    %54 = vector.shape_cast %53 : vector<8xf32> to vector<8x1xf32>
    %55 = vector.broadcast %54 : vector<8x1xf32> to vector<8x16xf32>
    %56 = arith.divf %52, %55 : vector<8x16xf32>
    %57 = vector.extract_strided_slice %20 {offsets = [0, 8], sizes = [16, 8], strides = [1, 1]} : vector<16x16xf32> to vector<16x8xf32>
    %cst_38 = arith.constant dense<0.000000e+00> : vector<8x8xf32>
    %58 = tpu.matmul %56, %57, %cst_38 {dimension_numbers = #tpu.dot_dimension_numbers<[1], [0], [0], [1], [0, 0, 1, 1], [], []>} : vector<8x16xf32>, vector<16x8xf32>, vector<8x8xf32> -> vector<8x8xf32>
    %59 = tpu.concatenate %39, %58 in 1 : vector<8x8xf32>, vector<8x8xf32> -> vector<8x16xf32>
    %c0_i32 = arith.constant 0 : i32
    %60 = arith.cmpi eq, %arg2, %c0_i32 : i32
    %61 = arith.extui %60 : i1 to i32
    %c0_i32_39 = arith.constant 0 : i32
    %62 = arith.cmpi ne, %61, %c0_i32_39 : i32
    scf.if %62 {
      %c0_49 = arith.constant 0 : index
      %c0_50 = arith.constant 0 : index
      %72 = vector.load %arg11[%c0_49, %c0_50] : memref<1x32xf32, #tpu.memory_space<vmem>>, vector<1x32xf32>
      %73 = vector.shape_cast %72 : vector<1x32xf32> to vector<1x32xf32>
      %74 = vector.broadcast %73 : vector<1x32xf32> to vector<8x32xf32>
      %c0_51 = arith.constant 0 : index
      %c0_52 = arith.constant 0 : index
      %75 = vector.load %arg14[%c0_51, %c0_52] : memref<8x32xf32, #tpu.memory_space<vmem>>, vector<8x32xf32>
      tpu.vector_store %arg14[%c0_51, %c0_52], %74 {strides = array<i32>} : memref<8x32xf32, #tpu.memory_space<vmem>>, vector<8x32xf32>,
    } else {
    }
    %c0_40 = arith.constant 0 : index
    %c0_41 = arith.constant 0 : index
    %63 = vector.load %arg14[%c0_40, %c0_41] : memref<8x32xf32, #tpu.memory_space<vmem>>, vector<8x32xf32>
    %c0_42 = arith.constant 0 : index
    %c0_43 = arith.constant 0 : index
    %c0_44 = arith.constant 0 : index
    %64 = vector.load %arg10[%c0_42, %c0_43, %c0_44] : memref<1x16x32xf32, #tpu.memory_space<vmem>>, vector<1x16x32xf32>
    %65 = vector.shape_cast %64 : vector<1x16x32xf32> to vector<16x32xf32>
    %cst_45 = arith.constant dense<0.000000e+00> : vector<8x32xf32>
    %66 = tpu.matmul %59, %65, %cst_45 {dimension_numbers = #tpu.dot_dimension_numbers<[1], [0], [0], [1], [0, 0, 1, 1], [], []>} : vector<8x16xf32>, vector<16x32xf32>, vector<8x32xf32> -> vector<8x32xf32>
    %67 = arith.addf %63, %66 : vector<8x32xf32>
    %c0_46 = arith.constant 0 : index
    %c0_47 = arith.constant 0 : index
    %68 = vector.load %arg14[%c0_46, %c0_47] : memref<8x32xf32, #tpu.memory_space<vmem>>, vector<8x32xf32>
    tpu.vector_store %arg14[%c0_46, %c0_47], %67 {strides = array<i32>} : memref<8x32xf32, #tpu.memory_space<vmem>>, vector<8x32xf32>,
    %c1_i32 = arith.constant 1 : i32
    %69 = arith.cmpi eq, %arg2, %c1_i32 : i32
    %70 = arith.extui %69 : i1 to i32
    %c0_i32_48 = arith.constant 0 : i32
    %71 = arith.cmpi ne, %70, %c0_i32_48 : i32
    scf.if %71 {
      %c0_49 = arith.constant 0 : index
      %c0_50 = arith.constant 0 : index
      %72 = vector.load %arg14[%c0_49, %c0_50] : memref<8x32xf32, #tpu.memory_space<vmem>>, vector<8x32xf32>
      %c0_51 = arith.constant 0 : index
      %c0_52 = arith.constant 0 : index
      %c0_53 = arith.constant 0 : index
      %73 = vector.load %arg12[%c0_51, %c0_52, %c0_53] : memref<1x8x32xf32, #tpu.memory_space<vmem>>, vector<1x8x32xf32>
      %74 = vector.shape_cast %73 : vector<1x8x32xf32> to vector<8x32xf32>
      %75 = vector.shape_cast %72 : vector<8x32xf32> to vector<1x8x32xf32>
      tpu.vector_store %arg12[%c0_51, %c0_52, %c0_53], %75 {strides = array<i32>} : memref<1x8x32xf32, #tpu.memory_space<vmem>>, vector<1x8x32xf32>,
    } else {
    }
    return
  }
  func.func @transform_0(%arg0: i32, %arg1: i32, %arg2: i32) -> (i32, i32, i32) {
    %c0_i32 = arith.constant 0 : i32
    %c0_i32_0 = arith.constant 0 : i32
    return %arg0, %arg1, %c0_i32 : i32, i32, i32
  }
  func.func @transform_1(%arg0: i32, %arg1: i32, %arg2: i32) -> (i32, i32, i32) {
    %c0_i32 = arith.constant 0 : i32
    %c0_i32_0 = arith.constant 0 : i32
    %c0_i32_1 = arith.constant 0 : i32
    return %arg0, %c0_i32, %c0_i32_0 : i32, i32, i32
  }
  func.func @transform_2(%arg0: i32, %arg1: i32, %arg2: i32) -> (i32, i32, i32) {
    %c0_i32 = arith.constant 0 : i32
    %c0_i32_0 = arith.constant 0 : i32
    %c0_i32_1 = arith.constant 0 : i32
    return %arg2, %c0_i32, %c0_i32_0 : i32, i32, i32
  }
  func.func @transform_3(%arg0: i32, %arg1: i32, %arg2: i32) -> (i32, i32, i32) {
    %c0_i32 = arith.constant 0 : i32
    %c0_i32_0 = arith.constant 0 : i32
    %c0_i32_1 = arith.constant 0 : i32
    return %arg2, %c0_i32, %c0_i32_0 : i32, i32, i32
  }
  func.func @transform_4(%arg0: i32, %arg1: i32, %arg2: i32) -> (i32, i32, i32) {
    %c0_i32 = arith.constant 0 : i32
    %c0_i32_0 = arith.constant 0 : i32
    %c0_i32_1 = arith.constant 0 : i32
    return %arg2, %c0_i32, %c0_i32_0 : i32, i32, i32
  }
  func.func @transform_5(%arg0: i32, %arg1: i32, %arg2: i32) -> (i32, i32, i32) {
    %c0_i32 = arith.constant 0 : i32
    %c0_i32_0 = arith.constant 0 : i32
    %c0_i32_1 = arith.constant 0 : i32
    return %arg2, %c0_i32, %c0_i32_0 : i32, i32, i32
  }
  func.func @transform_6(%arg0: i32, %arg1: i32, %arg2: i32) -> (i32, i32, i32) {
    %c0_i32 = arith.constant 0 : i32
    %c0_i32_0 = arith.constant 0 : i32
    %c0_i32_1 = arith.constant 0 : i32
    return %arg2, %c0_i32, %c0_i32_0 : i32, i32, i32
  }
  func.func @transform_7(%arg0: i32, %arg1: i32, %arg2: i32) -> (i32, i32, i32) {
    %c0_i32 = arith.constant 0 : i32
    %c0_i32_0 = arith.constant 0 : i32
    %c0_i32_1 = arith.constant 0 : i32
    return %arg2, %c0_i32, %c0_i32_0 : i32, i32, i32
  }
  func.func @transform_8(%arg0: i32, %arg1: i32, %arg2: i32) -> (i32, i32) {
    %c0_i32 = arith.constant 0 : i32
    %c0_i32_0 = arith.constant 0 : i32
    %c0_i32_1 = arith.constant 0 : i32
    return %c0_i32, %c0_i32_0 : i32, i32
  }
  func.func @transform_9(%arg0: i32, %arg1: i32, %arg2: i32) -> (i32, i32, i32) {
    %c0_i32 = arith.constant 0 : i32
    %c0_i32_0 = arith.constant 0 : i32
    return %arg0, %arg1, %c0_i32 : i32, i32, i32
  }
  func.func @transform_10(%arg0: i32, %arg1: i32, %arg2: i32) -> (i32, i32, i32, i32) {
    %c0_i32 = arith.constant 0 : i32
    %c0_i32_0 = arith.constant 0 : i32
    return %arg0, %arg2, %arg1, %c0_i32 : i32, i32, i32, i32
  }
}

</mosaic_0001>

<llo_original>
// kernel: tpu_custom_call.1
$region0: #{tpu_custom_call.1}
  #allocation0 [shape = 'u32[]', space=smem, size = 0x4, offset = 0x4, fixed_abs, tag = 'smem constant byte address 0x4 - core index']
  #allocation1 [shape = 'u32[72,128]{1,0:T(1,128)}', space=vmem, size = 0x9000, scoped, tag = 'internal scratch']
  #allocation2 [shape = 'f32[8,32]{1,0:T(8,128)}', space=vmem, size = 0x1000, scoped, tag = 'scratch operand']
  %s0 = inlined_call_operand.vmem [shape: f32[2,16,32], index: 0, kind: input, shape index: {}]
  %s1 = inlined_call_operand.vmem [shape: f32[2,16,32], index: 1, kind: input, shape index: {}]
  %s2 = inlined_call_operand.vmem [shape: f32[2,32,16], index: 2, kind: input, shape index: {}]
  %s3 = inlined_call_operand.vmem [shape: f32[2,1,16], index: 3, kind: input, shape index: {}]
  %s4 = inlined_call_operand.vmem [shape: f32[2,32,16], index: 4, kind: input, shape index: {}]
  %s5 = inlined_call_operand.vmem [shape: f32[2,32,16], index: 5, kind: input, shape index: {}]
  %s6 = inlined_call_operand.vmem [shape: f32[2,1,16], index: 6, kind: input, shape index: {}]
  %s7 = inlined_call_operand.vmem [shape: f32[2,16,32], index: 7, kind: input, shape index: {}]
  %s8 = inlined_call_operand.vmem [shape: f32[1,32], index: 8, kind: input, shape index: {}]
  %s9 = inlined_call_operand.hbm [shape: f32[2,16,32], index: 9, kind: output, shape index: {0}]
  %s10 = inlined_call_operand.hbm [shape: f32[2,4,16,16], index: 10, kind: output, shape index: {1}]
  %11 = xla_tuple %s9, %s10
  %s12 = sld [smem:[#allocation0]]
  $region85: #{tpu_custom_call.1} parent=0
    _
  %s14 = ssub.s32 1, %s12
  %s15 = scalar_select 0, %s14, %s12
  $region1: #{tpu_custom_call.1} parent=0
    #allocation3 [shape = 'u8[8192]{0}', space=vmem, size = 0x2000, scoped, tag = 'output window, operand 0']
    #allocation4 [shape = 's32[2]{0}', space=sflag, size = 0x8, scoped, tag = 'scoped memory for tpu_custom_call.1']
    #allocation5 [shape = 'u8[16384]{0}', space=vmem, size = 0x4000, scoped, tag = 'output window, operand 1']
    #allocation6 [shape = 's32[2]{0}', space=sflag, size = 0x8, scoped, tag = 'scoped memory for tpu_custom_call.1']
    %16 = vsyncpa [#allocation4], 0
    %s17 = scalar_lea.sflag [#allocation4], 1
    %18 = vsyncpa %s17, 0
    %19 = vsyncpa [#allocation6], 0
    %s20 = scalar_lea.sflag [#allocation6], 1
    %21 = vsyncpa %s20, 0
    loop: start=0, step=1, limit=10
    $region2: #{tpu_custom_call.1} parent=1 // loop_pre_header
      _
    $region3: #{tpu_custom_call.1} parent=1 // loop_header
      %s23 = sphi 0, %s27
      %p24 = scmp.ge.s32.totalorder %s23, 10
      %s30 = sphi 0, %s49
      %s31 = sphi 0, %s45
      %s32 = sphi 0, %s41
      %s33 = sphi 0, %s30
      %s34 = sphi 0, %s31
      %s35 = sphi 0, %s32
      %s36 = sphi 0, %s33
      %s37 = sphi 0, %s34
      %s38 = sphi 0, %s35
      %s54 = sphi 0, %s56
      %s57 = sphi 0, %s54
      %s58 = sphi 0, %s57
      %s74 = sphi 0, %s58
      %s80 = sphi 0, %s82
      %s83 = sphi 0, %s80
      %s84 = sphi 0, %s83
      %s100 = sphi 0, %s84
      %s106 = sphi 0, %s108
      %s109 = sphi 0, %s106
      %s110 = sphi 0, %s109
      %s126 = sphi 0, %s110
      %s132 = sphi 0, %s134
      %s135 = sphi 0, %s132
      %s136 = sphi 0, %s135
      %s152 = sphi 0, %s136
      %s158 = sphi 0, %s160
      %s161 = sphi 0, %s158
      %s162 = sphi 0, %s161
      %s178 = sphi 0, %s162
      %s184 = sphi 0, %s186
      %s187 = sphi 0, %s184
      %s188 = sphi 0, %s187
      %s204 = sphi 0, %s188
      %s210 = sphi 0, %s212
      %s213 = sphi 0, %s210
      %s214 = sphi 0, %s213
      %s230 = sphi 0, %s214
      %s236 = sphi 0, %s238
      %s239 = sphi 0, %s236
      %s240 = sphi 0, %s239
      %s256 = sphi 0, %s240
      %s260 = sphi 0, %s260
      %s262 = sphi 0, %s260
      %s263 = sphi 0, %s262
      %s277 = sphi 0, %s263
      %s285 = sphi 0, %s287
      %s288 = sphi 0, %s285
      %s289 = sphi 0, %s288
      %s305 = sphi 0, %s289
      %s315 = sphi 0, %s317
      %s318 = sphi 0, %s315
      %s319 = sphi 0, %s318
      %s335 = sphi 0, %s319
    $region4: #{tpu_custom_call.1} parent=1 // loop_header_branch
      %26 = sbr.rel (%p24) target = $region8
    $region5: #{tpu_custom_call.1} parent=1 // loop_body
      %s28 = ssub.s32 %s23, 1
      %s29 = ssub.s32 %s23, 2
      %s39 = sadd.s32 1, %s32
      %p40 = scmp.ge.s32.totalorder %s39, 2
      %s41 = scalar_select %p40, 0, %s39
      %s42 = sadd.s32 1, %s31
      %s43 = scalar_select %p40, %s42, %s31
      %p44 = scmp.ge.s32.totalorder %s43, 2
      %s45 = scalar_select %p44, 0, %s43
      %s46 = sadd.s32 1, %s30
      %s47 = scalar_select %p44, %s46, %s30
      %p48 = scmp.ge.s32.totalorder %s47, 2
      %s49 = scalar_select %p48, 0, %s47
      %s50 = ssub.s32 %s30, %s49
      %s51 = ssub.s32 %s31, %s45
      %s52 = sor.u32 %s50, %s51
      %p53 = scmp.eq.s32.totalorder %s52, 0
      %s55 = sadd.s32 %s54, 1
      %s56 = scalar_select %p53, %s54, %s55
      %p59 = pneg %p53
      %p60 = scmp.eq.s32.totalorder %s23, 7
      %p61 = por %p59, %p60
      %p62 = scmp.ne.s32.totalorder %s54, %s57
      %p63 = scmp.eq.s32.totalorder %s23, 0
      %p64 = por %p62, %p63
      %p65 = scmp.ne.s32.totalorder %s54, %s57
      %p66 = scmp.eq.s32.totalorder %s28, 7
      %p67 = por %p65, %p66
      %p68 = scmp.ne.s32.totalorder %s57, %s58
      %p69 = scmp.eq.s32.totalorder %s28, 0
      %p70 = por %p68, %p69
      %p71 = scmp.ne.s32.totalorder %s57, %s58
      %p72 = scmp.eq.s32.totalorder %s29, 7
      %p73 = por %p71, %p72
      %p75 = scmp.ne.s32.totalorder %s58, %s74
      %p76 = scmp.eq.s32.totalorder %s29, 0
      %p77 = por %p75, %p76
      %s78 = ssub.s32 %s30, %s49
      %p79 = scmp.eq.s32.totalorder %s78, 0
      %s81 = sadd.s32 %s80, 1
      %s82 = scalar_select %p79, %s80, %s81
      %p85 = pneg %p79
      %p86 = scmp.eq.s32.totalorder %s23, 7
      %p87 = por %p85, %p86
      %p88 = scmp.ne.s32.totalorder %s80, %s83
      %p89 = scmp.eq.s32.totalorder %s23, 0
      %p90 = por %p88, %p89
      %p91 = scmp.ne.s32.totalorder %s80, %s83
      %p92 = scmp.eq.s32.totalorder %s28, 7
      %p93 = por %p91, %p92
      %p94 = scmp.ne.s32.totalorder %s83, %s84
      %p95 = scmp.eq.s32.totalorder %s28, 0
      %p96 = por %p94, %p95
      %p97 = scmp.ne.s32.totalorder %s83, %s84
      %p98 = scmp.eq.s32.totalorder %s29, 7
      %p99 = por %p97, %p98
      %p101 = scmp.ne.s32.totalorder %s84, %s100
      %p102 = scmp.eq.s32.totalorder %s29, 0
      %p103 = por %p101, %p102
      %s104 = ssub.s32 %s32, %s41
      %p105 = scmp.eq.s32.totalorder %s104, 0
      %s107 = sadd.s32 %s106, 1
      %s108 = scalar_select %p105, %s106, %s107
      %p111 = pneg %p105
      %p112 = scmp.eq.s32.totalorder %s23, 7
      %p113 = por %p111, %p112
      %p114 = scmp.ne.s32.totalorder %s106, %s109
      %p115 = scmp.eq.s32.totalorder %s23, 0
      %p116 = por %p114, %p115
      %p117 = scmp.ne.s32.totalorder %s106, %s109
      %p118 = scmp.eq.s32.totalorder %s28, 7
      %p119 = por %p117, %p118
      %p120 = scmp.ne.s32.totalorder %s109, %s110
      %p121 = scmp.eq.s32.totalorder %s28, 0
      %p122 = por %p120, %p121
      %p123 = scmp.ne.s32.totalorder %s109, %s110
      %p124 = scmp.eq.s32.totalorder %s29, 7
      %p125 = por %p123, %p124
      %p127 = scmp.ne.s32.totalorder %s110, %s126
      %p128 = scmp.eq.s32.totalorder %s29, 0
      %p129 = por %p127, %p128
      %s130 = ssub.s32 %s32, %s41
      %p131 = scmp.eq.s32.totalorder %s130, 0
      %s133 = sadd.s32 %s132, 1
      %s134 = scalar_select %p131, %s132, %s133
      %p137 = pneg %p131
      %p138 = scmp.eq.s32.totalorder %s23, 7
      %p139 = por %p137, %p138
      %p140 = scmp.ne.s32.totalorder %s132, %s135
      %p141 = scmp.eq.s32.totalorder %s23, 0
      %p142 = por %p140, %p141
      %p143 = scmp.ne.s32.totalorder %s132, %s135
      %p144 = scmp.eq.s32.totalorder %s28, 7
      %p145 = por %p143, %p144
      %p146 = scmp.ne.s32.totalorder %s135, %s136
      %p147 = scmp.eq.s32.totalorder %s28, 0
      %p148 = por %p146, %p147
      %p149 = scmp.ne.s32.totalorder %s135, %s136
      %p150 = scmp.eq.s32.totalorder %s29, 7
      %p151 = por %p149, %p150
      %p153 = scmp.ne.s32.totalorder %s136, %s152
      %p154 = scmp.eq.s32.totalorder %s29, 0
      %p155 = por %p153, %p154
      %s156 = ssub.s32 %s32, %s41
      %p157 = scmp.eq.s32.totalorder %s156, 0
      %s159 = sadd.s32 %s158, 1
      %s160 = scalar_select %p157, %s158, %s159
      %p163 = pneg %p157
      %p164 = scmp.eq.s32.totalorder %s23, 7
      %p165 = por %p163, %p164
      %p166 = scmp.ne.s32.totalorder %s158, %s161
      %p167 = scmp.eq.s32.totalorder %s23, 0
      %p168 = por %p166, %p167
      %p169 = scmp.ne.s32.totalorder %s158, %s161
      %p170 = scmp.eq.s32.totalorder %s28, 7
      %p171 = por %p169, %p170
      %p172 = scmp.ne.s32.totalorder %s161, %s162
      %p173 = scmp.eq.s32.totalorder %s28, 0
      %p174 = por %p172, %p173
      %p175 = scmp.ne.s32.totalorder %s161, %s162
      %p176 = scmp.eq.s32.totalorder %s29, 7
      %p177 = por %p175, %p176
      %p179 = scmp.ne.s32.totalorder %s162, %s178
      %p180 = scmp.eq.s32.totalorder %s29, 0
      %p181 = por %p179, %p180
      %s182 = ssub.s32 %s32, %s41
      %p183 = scmp.eq.s32.totalorder %s182, 0
      %s185 = sadd.s32 %s184, 1
      %s186 = scalar_select %p183, %s184, %s185
      %p189 = pneg %p183
      %p190 = scmp.eq.s32.totalorder %s23, 7
      %p191 = por %p189, %p190
      %p192 = scmp.ne.s32.totalorder %s184, %s187
      %p193 = scmp.eq.s32.totalorder %s23, 0
      %p194 = por %p192, %p193
      %p195 = scmp.ne.s32.totalorder %s184, %s187
      %p196 = scmp.eq.s32.totalorder %s28, 7
      %p197 = por %p195, %p196
      %p198 = scmp.ne.s32.totalorder %s187, %s188
      %p199 = scmp.eq.s32.totalorder %s28, 0
      %p200 = por %p198, %p199
      %p201 = scmp.ne.s32.totalorder %s187, %s188
      %p202 = scmp.eq.s32.totalorder %s29, 7
      %p203 = por %p201, %p202
      %p205 = scmp.ne.s32.totalorder %s188, %s204
      %p206 = scmp.eq.s32.totalorder %s29, 0
      %p207 = por %p205, %p206
      %s208 = ssub.s32 %s32, %s41
      %p209 = scmp.eq.s32.totalorder %s208, 0
      %s211 = sadd.s32 %s210, 1
      %s212 = scalar_select %p209, %s210, %s211
      %p215 = pneg %p209
      %p216 = scmp.eq.s32.totalorder %s23, 7
      %p217 = por %p215, %p216
      %p218 = scmp.ne.s32.totalorder %s210, %s213
      %p219 = scmp.eq.s32.totalorder %s23, 0
      %p220 = por %p218, %p219
      %p221 = scmp.ne.s32.totalorder %s210, %s213
      %p222 = scmp.eq.s32.totalorder %s28, 7
      %p223 = por %p221, %p222
      %p224 = scmp.ne.s32.totalorder %s213, %s214
      %p225 = scmp.eq.s32.totalorder %s28, 0
      %p226 = por %p224, %p225
      %p227 = scmp.ne.s32.totalorder %s213, %s214
      %p228 = scmp.eq.s32.totalorder %s29, 7
      %p229 = por %p227, %p228
      %p231 = scmp.ne.s32.totalorder %s214, %s230
      %p232 = scmp.eq.s32.totalorder %s29, 0
      %p233 = por %p231, %p232
      %s234 = ssub.s32 %s32, %s41
      %p235 = scmp.eq.s32.totalorder %s234, 0
      %s237 = sadd.s32 %s236, 1
      %s238 = scalar_select %p235, %s236, %s237
      %p241 = pneg %p235
      %p242 = scmp.eq.s32.totalorder %s23, 7
      %p243 = por %p241, %p242
      %p244 = scmp.ne.s32.totalorder %s236, %s239
      %p245 = scmp.eq.s32.totalorder %s23, 0
      %p246 = por %p244, %p245
      %p247 = scmp.ne.s32.totalorder %s236, %s239
      %p248 = scmp.eq.s32.totalorder %s28, 7
      %p249 = por %p247, %p248
      %p250 = scmp.ne.s32.totalorder %s239, %s240
      %p251 = scmp.eq.s32.totalorder %s28, 0
      %p252 = por %p250, %p251
      %p253 = scmp.ne.s32.totalorder %s239, %s240
      %p254 = scmp.eq.s32.totalorder %s29, 7
      %p255 = por %p253, %p254
      %p257 = scmp.ne.s32.totalorder %s240, %s256
      %p258 = scmp.eq.s32.totalorder %s29, 0
      %p259 = por %p257, %p258
      %s261 = sadd.s32 %s260, 1
      %p264 = scmp.eq.s32.totalorder %s23, 7
      %p265 = scmp.ne.s32.totalorder %s260, %s262
      %p266 = scmp.eq.s32.totalorder %s23, 0
      %p267 = por %p265, %p266
      %p268 = scmp.ne.s32.totalorder %s260, %s262
      %p269 = scmp.eq.s32.totalorder %s28, 7
      %p270 = por %p268, %p269
      %p271 = scmp.ne.s32.totalorder %s262, %s263
      %p272 = scmp.eq.s32.totalorder %s28, 0
      %p273 = por %p271, %p272
      %p274 = scmp.ne.s32.totalorder %s262, %s263
      %p275 = scmp.eq.s32.totalorder %s29, 7
      %p276 = por %p274, %p275
      %p278 = scmp.ne.s32.totalorder %s263, %s277
      %p279 = scmp.eq.s32.totalorder %s29, 0
      %p280 = por %p278, %p279
      %s281 = ssub.s32 %s30, %s49
      %s282 = ssub.s32 %s31, %s45
      %s283 = sor.u32 %s281, %s282
      %p284 = scmp.eq.s32.totalorder %s283, 0
      %s286 = sadd.s32 %s285, 1
      %s287 = scalar_select %p284, %s285, %s286
      %p290 = pneg %p284
      %p291 = scmp.eq.s32.totalorder %s23, 7
      %p292 = por %p290, %p291
      %p293 = scmp.ne.s32.totalorder %s285, %s288
      %p294 = scmp.eq.s32.totalorder %s23, 0
      %p295 = por %p293, %p294
      %p296 = scmp.ne.s32.totalorder %s285, %s288
      %p297 = scmp.eq.s32.totalorder %s28, 7
      %p298 = por %p296, %p297
      %p299 = scmp.ne.s32.totalorder %s288, %s289
      %p300 = scmp.eq.s32.totalorder %s28, 0
      %p301 = por %p299, %p300
      %p302 = scmp.ne.s32.totalorder %s288, %s289
      %p303 = scmp.eq.s32.totalorder %s29, 7
      %p304 = por %p302, %p303
      %p306 = scmp.ne.s32.totalorder %s289, %s305
      %p307 = scmp.eq.s32.totalorder %s29, 0
      %p308 = por %p306, %p307
      %s309 = ssub.s32 %s30, %s49
      %s310 = ssub.s32 %s32, %s41
      %s311 = sor.u32 %s309, %s310
      %s312 = ssub.s32 %s31, %s45
      %s313 = sor.u32 %s311, %s312
      %p314 = scmp.eq.s32.totalorder %s313, 0
      %s316 = sadd.s32 %s315, 1
      %s317 = scalar_select %p314, %s315, %s316
      %p320 = pneg %p314
      %p321 = scmp.eq.s32.totalorder %s23, 7
      %p322 = por %p320, %p321
      %p323 = scmp.ne.s32.totalorder %s315, %s318
      %p324 = scmp.eq.s32.totalorder %s23, 0
      %p325 = por %p323, %p324
      %p326 = scmp.ne.s32.totalorder %s315, %s318
      %p327 = scmp.eq.s32.totalorder %s28, 7
      %p328 = por %p326, %p327
      %p329 = scmp.ne.s32.totalorder %s318, %s319
      %p330 = scmp.eq.s32.totalorder %s28, 0
      %p331 = por %p329, %p330
      %p332 = scmp.ne.s32.totalorder %s318, %s319
      %p333 = scmp.eq.s32.totalorder %s29, 7
      %p334 = por %p332, %p333
      %p336 = scmp.ne.s32.totalorder %s319, %s335
      %p337 = scmp.eq.s32.totalorder %s29, 0
      %p338 = por %p336, %p337
      %p339 = scmp.le.s32.totalorder 1, %s23
      %p340 = scmp.lt.s32.totalorder %s23, 9
      %p341 = pnand %p339, %p340
      %p342 = pneg %p341
      // Predicated region
      $region9: #{tpu_custom_call.1} parent=5 // pred_check
        _
      $region10: #{tpu_custom_call.1} parent=5 // pred_check_branch
        %344 = sbr.rel (%p341) target = $region12
      $region11: #{tpu_custom_call.1} parent=5 // pred_region
        %s345 = ssub.s32 %s23, 1
        // Predicated region
        $region13: #{tpu_custom_call.1} parent=11 // pred_check
          %p346 = pneg %p273
        $region14: #{tpu_custom_call.1} parent=11 // pred_check_branch
          %348 = sbr.rel (%p346) target = $region16
        $region15: #{tpu_custom_call.1} parent=11 // pred_region
          _
        $region16: #{tpu_custom_call.1} parent=11 // pred_fallthru
          _
      $region12: #{tpu_custom_call.1} parent=5 // pred_fallthru
        _
      %p349 = scmp.lt.s32.totalorder %s23, 8
      // Predicated region
      $region17: #{tpu_custom_call.1} parent=5 // pred_check
        %p350 = pneg %p349
      $region18: #{tpu_custom_call.1} parent=5 // pred_check_branch
        %352 = sbr.rel (%p350) target = $region20
      $region19: #{tpu_custom_call.1} parent=5 // pred_region
        // Predicated region
        $region21: #{tpu_custom_call.1} parent=19 // pred_check
          %p353 = pneg %p64
        $region22: #{tpu_custom_call.1} parent=19 // pred_check_branch
          %355 = sbr.rel (%p353) target = $region24
        $region23: #{tpu_custom_call.1} parent=19 // pred_region
          %p356 = scmp.lt.s32.totalorder %s30, 1
          %s357 = scalar_select %p356, %s30, 1
          %p358 = scmp.lt.s32.totalorder %s31, 1
          %s359 = scalar_select %p358, %s31, 1
          %s360 = smul.addr %s357, 2
          %s361 = sadd.s32 %s359, %s360
          %s362 = smul.addr %s361, 8
          %s363 = scalar_lea.vmem %s0, %s362
        $region24: #{tpu_custom_call.1} parent=19 // pred_fallthru
          _
        // Predicated region
        $region25: #{tpu_custom_call.1} parent=19 // pred_check
          %p364 = pneg %p90
        $region26: #{tpu_custom_call.1} parent=19 // pred_check_branch
          %366 = sbr.rel (%p364) target = $region28
        $region27: #{tpu_custom_call.1} parent=19 // pred_region
          %p367 = scmp.lt.s32.totalorder %s30, 1
          %s368 = scalar_select %p367, %s30, 1
          %s369 = smul.addr %s368, 2
          %s370 = smul.addr %s369, 8
          %s371 = scalar_lea.vmem %s1, %s370
        $region28: #{tpu_custom_call.1} parent=19 // pred_fallthru
          _
        // Predicated region
        $region29: #{tpu_custom_call.1} parent=19 // pred_check
          %p372 = pneg %p116
        $region30: #{tpu_custom_call.1} parent=19 // pred_check_branch
          %374 = sbr.rel (%p372) target = $region32
        $region31: #{tpu_custom_call.1} parent=19 // pred_region
          %p375 = scmp.lt.s32.totalorder %s32, 1
          %s376 = scalar_select %p375, %s32, 1
          %s377 = smul.addr %s376, 4
          %s378 = smul.addr %s377, 8
          %s379 = scalar_lea.vmem %s2, %s378
        $region32: #{tpu_custom_call.1} parent=19 // pred_fallthru
          _
        // Predicated region
        $region33: #{tpu_custom_call.1} parent=19 // pred_check
          %p380 = pneg %p142
        $region34: #{tpu_custom_call.1} parent=19 // pred_check_branch
          %382 = sbr.rel (%p380) target = $region36
        $region35: #{tpu_custom_call.1} parent=19 // pred_region
          %p383 = scmp.lt.s32.totalorder %s32, 1
          %s384 = scalar_select %p383, %s32, 1
          %s385 = scalar_lea.vmem %s3, %s384
        $region36: #{tpu_custom_call.1} parent=19 // pred_fallthru
          _
        // Predicated region
        $region37: #{tpu_custom_call.1} parent=19 // pred_check
          %p386 = pneg %p168
        $region38: #{tpu_custom_call.1} parent=19 // pred_check_branch
          %388 = sbr.rel (%p386) target = $region40
        $region39: #{tpu_custom_call.1} parent=19 // pred_region
          %p389 = scmp.lt.s32.totalorder %s32, 1
          %s390 = scalar_select %p389, %s32, 1
          %s391 = smul.addr %s390, 4
          %s392 = smul.addr %s391, 8
          %s393 = scalar_lea.vmem %s4, %s392
        $region40: #{tpu_custom_call.1} parent=19 // pred_fallthru
          _
        // Predicated region
        $region41: #{tpu_custom_call.1} parent=19 // pred_check
          %p394 = pneg %p194
        $region42: #{tpu_custom_call.1} parent=19 // pred_check_branch
          %396 = sbr.rel (%p394) target = $region44
        $region43: #{tpu_custom_call.1} parent=19 // pred_region
          %p397 = scmp.lt.s32.totalorder %s32, 1
          %s398 = scalar_select %p397, %s32, 1
          %s399 = smul.addr %s398, 4
          %s400 = smul.addr %s399, 8
          %s401 = scalar_lea.vmem %s5, %s400
        $region44: #{tpu_custom_call.1} parent=19 // pred_fallthru
          _
        // Predicated region
        $region45: #{tpu_custom_call.1} parent=19 // pred_check
          %p402 = pneg %p220
        $region46: #{tpu_custom_call.1} parent=19 // pred_check_branch
          %404 = sbr.rel (%p402) target = $region48
        $region47: #{tpu_custom_call.1} parent=19 // pred_region
          %p405 = scmp.lt.s32.totalorder %s32, 1
          %s406 = scalar_select %p405, %s32, 1
          %s407 = scalar_lea.vmem %s6, %s406
        $region48: #{tpu_custom_call.1} parent=19 // pred_fallthru
          _
        // Predicated region
        $region49: #{tpu_custom_call.1} parent=19 // pred_check
          %p408 = pneg %p246
        $region50: #{tpu_custom_call.1} parent=19 // pred_check_branch
          %410 = sbr.rel (%p408) target = $region52
        $region51: #{tpu_custom_call.1} parent=19 // pred_region
          %p411 = scmp.lt.s32.totalorder %s32, 1
          %s412 = scalar_select %p411, %s32, 1
          %s413 = smul.addr %s412, 2
          %s414 = smul.addr %s413, 8
          %s415 = scalar_lea.vmem %s7, %s414
        $region52: #{tpu_custom_call.1} parent=19 // pred_fallthru
          _
      $region20: #{tpu_custom_call.1} parent=5 // pred_fallthru
        _
      %p416 = scmp.le.s32.totalorder 1, %s23
      %p417 = scmp.lt.s32.totalorder %s23, 9
      %p418 = pnand %p416, %p417
      %p419 = pneg %p418
      // Predicated region
      $region53: #{tpu_custom_call.1} parent=5 // pred_check
        _
      $region54: #{tpu_custom_call.1} parent=5 // pred_check_branch
        %421 = sbr.rel (%p418) target = $region56
      $region55: #{tpu_custom_call.1} parent=5 // pred_region
        %s422 = ssub.s32 %s23, 1
        %p423 = scmp.lt.s32.totalorder %s33, 1
        %s424 = scalar_select %p423, %s33, 1
        %p425 = scmp.lt.s32.totalorder %s34, 1
        %s426 = scalar_select %p425, %s34, 1
        %s427 = smul.addr %s424, 2
        %s428 = sadd.s32 %s426, %s427
        %s429 = smul.addr %s428, 8
        %s430 = scalar_lea.vmem %s0, %s429
        %p431 = pneg %p70
        %p432 = pneg %p67
        %p433 = scmp.lt.s32.totalorder %s33, 1
        %s434 = scalar_select %p433, %s33, 1
        %s435 = smul.addr %s434, 2
        %s436 = smul.addr %s435, 8
        %s437 = scalar_lea.vmem %s1, %s436
        %p438 = pneg %p96
        %p439 = pneg %p93
        %p440 = scmp.lt.s32.totalorder %s35, 1
        %s441 = scalar_select %p440, %s35, 1
        %s442 = smul.addr %s441, 4
        %s443 = smul.addr %s442, 8
        %s444 = scalar_lea.vmem %s2, %s443
        %p445 = pneg %p122
        %p446 = pneg %p119
        %p447 = scmp.lt.s32.totalorder %s35, 1
        %s448 = scalar_select %p447, %s35, 1
        %s449 = scalar_lea.vmem %s3, %s448
        %p450 = pneg %p148
        %p451 = pneg %p145
        %p452 = scmp.lt.s32.totalorder %s35, 1
        %s453 = scalar_select %p452, %s35, 1
        %s454 = smul.addr %s453, 4
        %s455 = smul.addr %s454, 8
        %s456 = scalar_lea.vmem %s4, %s455
        %p457 = pneg %p174
        %p458 = pneg %p171
        %p459 = scmp.lt.s32.totalorder %s35, 1
        %s460 = scalar_select %p459, %s35, 1
        %s461 = smul.addr %s460, 4
        %s462 = smul.addr %s461, 8
        %s463 = scalar_lea.vmem %s5, %s462
        %p464 = pneg %p200
        %p465 = pneg %p197
        %p466 = scmp.lt.s32.totalorder %s35, 1
        %s467 = scalar_select %p466, %s35, 1
        %s468 = scalar_lea.vmem %s6, %s467
        %p469 = pneg %p226
        %p470 = pneg %p223
        %p471 = scmp.lt.s32.totalorder %s35, 1
        %s472 = scalar_select %p471, %s35, 1
        %s473 = smul.addr %s472, 2
        %s474 = smul.addr %s473, 8
        %s475 = scalar_lea.vmem %s7, %s474
        %p476 = pneg %p252
        %p477 = pneg %p249
        %p478 = pneg %p273
        %p479 = pneg %p270
        %p480 = pneg %p301
        %p481 = pneg %p298
        %s482 = sand.u32 %s288, 1
        %s483 = scalar_lea.sflag [#allocation4], %s482
        %s484 = sand.u32 %s288, 1
        %s485 = smul.addr %s484, 8
        %s486 = scalar_lea.vmem [#allocation3], %s485
        %p487 = pneg %p331
        %p488 = pneg %p328
        %s489 = sand.u32 %s318, 1
        %s490 = scalar_lea.sflag [#allocation6], %s489
        %s491 = sand.u32 %s318, 1
        %s492 = smul.addr %s491, 16
        %s493 = scalar_lea.vmem [#allocation5], %s492
        %p494 = scmp.lt.s32.totalorder %s33, 1
        %s495 = scalar_select %p494, %s33, 1
        %p496 = scmp.lt.s32.totalorder %s34, 1
        %s497 = scalar_select %p496, %s34, 1
        %s498 = smul.addr %s495, 2
        %s499 = sadd.s32 %s497, %s498
        %s500 = smul.addr %s499, 8
        %s501 = scalar_lea.vmem %s0, %s500
        %p502 = scmp.lt.s32.totalorder %s33, 1
        %s503 = scalar_select %p502, %s33, 1
        %s504 = smul.addr %s503, 2
        %s505 = smul.addr %s504, 8
        %s506 = scalar_lea.vmem %s1, %s505
        %p507 = scmp.lt.s32.totalorder %s35, 1
        %s508 = scalar_select %p507, %s35, 1
        %s509 = smul.addr %s508, 4
        %s510 = smul.addr %s509, 8
        %s511 = scalar_lea.vmem %s2, %s510
        %p512 = scmp.lt.s32.totalorder %s35, 1
        %s513 = scalar_select %p512, %s35, 1
        %s514 = scalar_lea.vmem %s3, %s513
        %p515 = scmp.lt.s32.totalorder %s35, 1
        %s516 = scalar_select %p515, %s35, 1
        %s517 = smul.addr %s516, 4
        %s518 = smul.addr %s517, 8
        %s519 = scalar_lea.vmem %s4, %s518
        %p520 = scmp.lt.s32.totalorder %s35, 1
        %s521 = scalar_select %p520, %s35, 1
        %s522 = smul.addr %s521, 4
        %s523 = smul.addr %s522, 8
        %s524 = scalar_lea.vmem %s5, %s523
        %p525 = scmp.lt.s32.totalorder %s35, 1
        %s526 = scalar_select %p525, %s35, 1
        %s527 = scalar_lea.vmem %s6, %s526
        %p528 = scmp.lt.s32.totalorder %s35, 1
        %s529 = scalar_select %p528, %s35, 1
        %s530 = smul.addr %s529, 2
        %s531 = smul.addr %s530, 8
        %s532 = scalar_lea.vmem %s7, %s531
        %s533 = smul.u32 2, %s35
        %v534 = vld [vmem:[%s501] sm:$0xff]
        %v535 = vld [vmem:[%s506] sm:$0xff]
        %v536 = vld [vmem:[%s506 + $0x8] sm:$0xff]
        %v537 = vld [vmem:[%s511] sm:$0xff]
        %v538 = vld [vmem:[%s511 + $0x8] sm:$0xff]
        %v539 = vld [vmem:[%s511 + $0x10] sm:$0xff]
        %v540 = vld [vmem:[%s511 + $0x18] sm:$0xff]
        %v541 = vld [vmem:[%s514] sm:$0x1]
        %v543 = vperm.slane %v541, 0
        %vm545 = vcmask 261120
        %v547 = vsel %vm545, %v534, 0
        %549 = vmatpush.msra.mxu0 0.0
        %550 = vmatpush.msra.mxu0 0.0
        %551 = vmatpush.msra.mxu0 0.0
        %552 = vmatpush.msra.mxu0 0.0
        %553 = vmatpush.msra.mxu0 0.0
        %554 = vmatpush.msra.mxu0 0.0
        %555 = vmatpush.msra.mxu0 0.0
        %556 = vmatpush.msra.mxu0 0.0
        %557 = vmatpush.msra.mxu0 0.0
        %558 = vmatpush.msra.mxu0 0.0
        %559 = vmatpush.msra.mxu0 0.0
        %560 = vmatpush.msra.mxu0 0.0
        %561 = vmatpush.msra.mxu0 %v540
        %562 = vmatpush.msra.mxu0 %v539
        %563 = vmatpush.msra.mxu0 %v538
        %564 = vmatpush.msra.mxu0 %v537
        %565 = vmatmul.f32.gmra.mxu0 %v547
        %v566 = vpop.f32.mrf.mxu0
        %v567 = vadd.f32 %v543, %v566
        %568 = vdwg.mxu0
        %v569 = vld [vmem:[%s519] sm:$0xff]
        %v570 = vld [vmem:[%s519 + $0x8] sm:$0xff]
        %v571 = vld [vmem:[%s519 + $0x10] sm:$0xff]
        %v572 = vld [vmem:[%s519 + $0x18] sm:$0xff]
        %v574 = vsel %vm545, %v535, 0
        %v577 = vsel %vm545, %v536, 0
        %579 = vmatpush.msra.mxu0 0.0
        %580 = vmatpush.msra.mxu0 0.0
        %581 = vmatpush.msra.mxu0 0.0
        %582 = vmatpush.msra.mxu0 0.0
        %583 = vmatpush.msra.mxu0 0.0
        %584 = vmatpush.msra.mxu0 0.0
        %585 = vmatpush.msra.mxu0 0.0
        %586 = vmatpush.msra.mxu0 0.0
        %587 = vmatpush.msra.mxu0 0.0
        %588 = vmatpush.msra.mxu0 0.0
        %589 = vmatpush.msra.mxu0 0.0
        %590 = vmatpush.msra.mxu0 0.0
        %591 = vmatpush.msra.mxu0 %v572
        %592 = vmatpush.msra.mxu0 %v571
        %593 = vmatpush.msra.mxu0 %v570
        %594 = vmatpush.msra.mxu0 %v569
        %595 = vmatmul.f32.gmra.mxu0 %v574
        %v596 = vpop.f32.mrf.mxu0
        %v597 = vadd.f32 0.0, %v596
        %598 = vmatmul.f32.gmra.mxu0 %v577
        %v599 = vpop.f32.mrf.mxu0
        %v600 = vadd.f32 0.0, %v599
        %601 = vdwg.mxu0
        %v602 = vld [vmem:[%s524] sm:$0xff]
        %v603 = vld [vmem:[%s524 + $0x8] sm:$0xff]
        %v604 = vld [vmem:[%s524 + $0x10] sm:$0xff]
        %v605 = vld [vmem:[%s524 + $0x18] sm:$0xff]
        %v606 = vld [vmem:[%s527] sm:$0x1]
        %v608 = vperm.slane %v606, 0
        %610 = vmatpush.msra.mxu0 0.0
        %611 = vmatpush.msra.mxu0 0.0
        %612 = vmatpush.msra.mxu0 0.0
        %613 = vmatpush.msra.mxu0 0.0
        %614 = vmatpush.msra.mxu0 0.0
        %615 = vmatpush.msra.mxu0 0.0
        %616 = vmatpush.msra.mxu0 0.0
        %617 = vmatpush.msra.mxu0 0.0
        %618 = vmatpush.msra.mxu0 0.0
        %619 = vmatpush.msra.mxu0 0.0
        %620 = vmatpush.msra.mxu0 0.0
        %621 = vmatpush.msra.mxu0 0.0
        %622 = vmatpush.msra.mxu0 %v605
        %623 = vmatpush.msra.mxu0 %v604
        %624 = vmatpush.msra.mxu0 %v603
        %625 = vmatpush.msra.mxu0 %v602
        %626 = vmatmul.f32.gmra.mxu0 %v574
        %v627 = vpop.f32.mrf.mxu0
        %v628 = vadd.f32 %v608, %v627
        %629 = vmatmul.f32.gmra.mxu0 %v577
        %v630 = vpop.f32.mrf.mxu0
        %v631 = vadd.f32 %v608, %v630
        %632 = vdwg.mxu0
        %vm633 = vcmask 64512
        %v635 = vsel %vm633, %v567, 0
        %v638 = vsel %vm633, %v597, 0
        %v641 = vsel %vm633, %v600, 0
        %643 = vmatpush.xpose.msra.mxu0 0.0
        %644 = vmatpush.xpose.msra.mxu0 0.0
        %645 = vmatpush.xpose.msra.mxu0 0.0
        %646 = vmatpush.xpose.msra.mxu0 0.0
        %647 = vmatpush.xpose.msra.mxu0 0.0
        %648 = vmatpush.xpose.msra.mxu0 0.0
        %649 = vmatpush.xpose.msra.mxu0 0.0
        %650 = vmatpush.xpose.msra.mxu0 0.0
        %651 = vmatpush.xpose.msra.mxu0 0.0
        %652 = vmatpush.xpose.msra.mxu0 0.0
        %653 = vmatpush.xpose.msra.mxu0 0.0
        %654 = vmatpush.xpose.msra.mxu0 0.0
        %655 = vmatpush.xpose.msra.mxu0 0.0
        %656 = vmatpush.xpose.msra.mxu0 0.0
        %657 = vmatpush.xpose.msra.mxu0 %v641
        %658 = vmatpush.xpose.msra.mxu0 %v638
        %659 = vmatmul.f32.gmra.mxu0 %v635
        %v660 = vpop.f32.mrf.mxu0
        %v661 = vadd.f32 0.0, %v660
        %662 = vdwg.mxu0
        %vm663 = vcmask 130048
        %664 = vst.msk [vmem:[%s493] sm:$0xff] %vm663, %v661
        %v665 = vsel %vm663, %v661, -inf
        %666 = vmax.xlane.f32.xlu0 %v665
        %v667 = vpop.xlane.xlu0 %666
        %v668 = vsub.f32 %v661, %v667
        %v669 = vmul.f32 %v668, 1.442695
        %v670 = vpow.pop %v669
        %v671 = vsel %vm663, %v670, 0.0
        %672 = vadd.xlane.f32.xlu0 %v671
        %v673 = vpop.xlane.xlu0 %672
        %v674 = vrcp.pop %v673
        %v675 = vmul.f32 %v673, %v674
        %v676 = vsub.f32 1.0, %v675
        %v677 = vmul.f32 %v674, %v676
        %v678 = vadd.f32 %v674, %v677
        %vm679 = vweird.f32 %v673
        %vm680 = vweird.f32 %v674
        %vm681 = vmor %vm679, %vm680
        %v682 = vsel %vm681, %v674, %v678
        %v683 = vand.u32 2147483647, %v673
        %vm684 = vcmp.eq.f32.partialorder %v683, 8.507059e+37
        %v685 = vand.u32 %v673, 2147483648
        %v686 = vor.u32 1.1754944e-38, %v685
        %v687 = vsel %vm684, %v686, %v682
        %v688 = vmul.f32 %v670, %v687
        %v690 = vsel %vm663, %v688, 0
        %692 = vmatpush.msra.mxu0 0.0
        %693 = vmatpush.msra.mxu0 0.0
        %694 = vmatpush.msra.mxu0 0.0
        %695 = vmatpush.msra.mxu0 0.0
        %696 = vmatpush.msra.mxu0 0.0
        %697 = vmatpush.msra.mxu0 0.0
        %698 = vmatpush.msra.mxu0 0.0
        %699 = vmatpush.msra.mxu0 0.0
        %700 = vmatpush.msra.mxu0 0.0
        %701 = vmatpush.msra.mxu0 0.0
        %702 = vmatpush.msra.mxu0 0.0
        %703 = vmatpush.msra.mxu0 0.0
        %704 = vmatpush.msra.mxu0 0.0
        %705 = vmatpush.msra.mxu0 0.0
        %706 = vmatpush.msra.mxu0 %v631
        %707 = vmatpush.msra.mxu0 %v628
        %708 = vmatmul.f32.gmra.mxu0 %v690
        %v709 = vpop.f32.mrf.mxu0
        %v710 = vadd.f32 0.0, %v709
        %711 = vdwg.mxu0
        %712 = vrot.lane.b32.xlu0 %v567, 120
        %v713 = vpop.permute.xlu0 %712
        %714 = vrot.lane.b32.xlu0 %v597, 120
        %v715 = vpop.permute.xlu0 %714
        %716 = vrot.lane.b32.xlu0 %v600, 120
        %v717 = vpop.permute.xlu0 %716
        %v718 = vsel %vm633, %v713, 0
        %v720 = vsel %vm633, %v715, 0
        %v722 = vsel %vm633, %v717, 0
        %724 = vmatpush.xpose.msra.mxu0 0.0
        %725 = vmatpush.xpose.msra.mxu0 0.0
        %726 = vmatpush.xpose.msra.mxu0 0.0
        %727 = vmatpush.xpose.msra.mxu0 0.0
        %728 = vmatpush.xpose.msra.mxu0 0.0
        %729 = vmatpush.xpose.msra.mxu0 0.0
        %730 = vmatpush.xpose.msra.mxu0 0.0
        %731 = vmatpush.xpose.msra.mxu0 0.0
        %732 = vmatpush.xpose.msra.mxu0 0.0
        %733 = vmatpush.xpose.msra.mxu0 0.0
        %734 = vmatpush.xpose.msra.mxu0 0.0
        %735 = vmatpush.xpose.msra.mxu0 0.0
        %736 = vmatpush.xpose.msra.mxu0 0.0
        %737 = vmatpush.xpose.msra.mxu0 0.0
        %738 = vmatpush.xpose.msra.mxu0 %v722
        %739 = vmatpush.xpose.msra.mxu0 %v720
        %740 = vmatmul.f32.gmra.mxu0 %v718
        %v741 = vpop.f32.mrf.mxu0
        %v742 = vadd.f32 0.0, %v741
        %743 = vdwg.mxu0
        %s744 = scalar_lea.vmem %s493, 8 [#allocation5]
        %745 = vst.msk [vmem:[%s744] sm:$0xff] %vm663, %v742
        %v746 = vsel %vm663, %v742, -inf
        %747 = vmax.xlane.f32.xlu0 %v746
        %v748 = vpop.xlane.xlu0 %747
        %v749 = vsub.f32 %v742, %v748
        %v750 = vmul.f32 %v749, 1.442695
        %v751 = vpow.pop %v750
        %v752 = vsel %vm663, %v751, 0.0
        %753 = vadd.xlane.f32.xlu0 %v752
        %v754 = vpop.xlane.xlu0 %753
        %v755 = vrcp.pop %v754
        %v756 = vmul.f32 %v754, %v755
        %v757 = vsub.f32 1.0, %v756
        %v758 = vmul.f32 %v755, %v757
        %v759 = vadd.f32 %v755, %v758
        %vm760 = vweird.f32 %v754
        %vm761 = vweird.f32 %v755
        %vm762 = vmor %vm760, %vm761
        %v763 = vsel %vm762, %v755, %v759
        %v764 = vand.u32 2147483647, %v754
        %vm765 = vcmp.eq.f32.partialorder %v764, 8.507059e+37
        %v766 = vand.u32 %v754, 2147483648
        %v767 = vor.u32 1.1754944e-38, %v766
        %v768 = vsel %vm765, %v767, %v763
        %v769 = vmul.f32 %v751, %v768
        %772 = vrot.lane.b32.xlu0 %v628, 120
        %v773 = vpop.permute.xlu0 %772
        %774 = vrot.lane.b32.xlu0 %v631, 120
        %v775 = vpop.permute.xlu0 %774
        %v779 = vsel %vm663, %v769, 0
        %781 = vmatpush.msra.mxu0 0.0
        %782 = vmatpush.msra.mxu0 0.0
        %783 = vmatpush.msra.mxu0 0.0
        %784 = vmatpush.msra.mxu0 0.0
        %785 = vmatpush.msra.mxu0 0.0
        %786 = vmatpush.msra.mxu0 0.0
        %787 = vmatpush.msra.mxu0 0.0
        %788 = vmatpush.msra.mxu0 0.0
        %789 = vmatpush.msra.mxu0 0.0
        %790 = vmatpush.msra.mxu0 0.0
        %791 = vmatpush.msra.mxu0 0.0
        %792 = vmatpush.msra.mxu0 0.0
        %793 = vmatpush.msra.mxu0 0.0
        %794 = vmatpush.msra.mxu0 0.0
        %795 = vmatpush.msra.mxu0 %v775
        %796 = vmatpush.msra.mxu0 %v773
        %797 = vmatmul.f32.gmra.mxu0 %v779
        %v798 = vpop.f32.mrf.mxu0
        %v799 = vadd.f32 0.0, %v798
        %800 = vdwg.mxu0
        %802 = vrot.lane.b32.xlu0 %v799, 8
        %v803 = vpop.permute.xlu0 %802
        %v805 = vsel %vm633, %v710, %v803
        %p806 = scmp.eq.s32.totalorder %s35, 0
        // Predicated region
        $region57: #{tpu_custom_call.1} parent=55 // pred_check
          %p807 = pneg %p806
        $region58: #{tpu_custom_call.1} parent=55 // pred_check_branch
          %809 = sbr.rel (%p807) target = $region60
        $region59: #{tpu_custom_call.1} parent=55 // pred_region
          %v810 = vld [vmem:[%s8] sm:$0x1]
          %v812 = vperm.slane %v810, 0
          %814 = vst.msk [vmem:[#allocation2] sm:$0xff] %vm545, %v812
        $region60: #{tpu_custom_call.1} parent=55 // pred_fallthru
          _
        %v815 = vld [vmem:[#allocation2] sm:$0xff]
        %v816 = vld [vmem:[%s532] sm:$0xff]
        %v817 = vld [vmem:[%s532 + $0x8] sm:$0xff]
        %v819 = vsel %vm663, %v805, 0
        %821 = vmatpush.msra.mxu0 0.0
        %822 = vmatpush.msra.mxu0 0.0
        %823 = vmatpush.msra.mxu0 0.0
        %824 = vmatpush.msra.mxu0 0.0
        %825 = vmatpush.msra.mxu0 0.0
        %826 = vmatpush.msra.mxu0 0.0
        %827 = vmatpush.msra.mxu0 0.0
        %828 = vmatpush.msra.mxu0 0.0
        %829 = vmatpush.msra.mxu0 0.0
        %830 = vmatpush.msra.mxu0 0.0
        %831 = vmatpush.msra.mxu0 0.0
        %832 = vmatpush.msra.mxu0 0.0
        %833 = vmatpush.msra.mxu0 0.0
        %834 = vmatpush.msra.mxu0 0.0
        %835 = vmatpush.msra.mxu0 %v817
        %836 = vmatpush.msra.mxu0 %v816
        %837 = vmatmul.f32.gmra.mxu0 %v819
        %v838 = vpop.f32.mrf.mxu0
        %v839 = vadd.f32 0.0, %v838
        %840 = vdwg.mxu0
        %v841 = vadd.f32 %v815, %v839
        %842 = vst.msk [vmem:[#allocation2] sm:$0xff] %vm545, %v841
        %p843 = scmp.eq.s32.totalorder %s35, 1
        // Predicated region
        $region61: #{tpu_custom_call.1} parent=55 // pred_check
          %p844 = pneg %p843
        $region62: #{tpu_custom_call.1} parent=55 // pred_check_branch
          %846 = sbr.rel (%p844) target = $region64
        $region63: #{tpu_custom_call.1} parent=55 // pred_region
          %v847 = vld [vmem:[#allocation2] sm:$0xff]
          %848 = vst.msk [vmem:[%s486] sm:$0xff] %vm545, %v847
        $region64: #{tpu_custom_call.1} parent=55 // pred_fallthru
          _
        %s849 = sand.u32 %s288, 1
        %s850 = scalar_lea.sflag [#allocation4], %s849
        %s851 = sand.u32 %s288, 1
        %s852 = smul.addr %s851, 8
        %s853 = scalar_lea.vmem [#allocation3], %s852
        %s854 = sand.u32 %s318, 1
        %s855 = scalar_lea.sflag [#allocation6], %s854
        %s856 = sand.u32 %s318, 1
        %s857 = smul.addr %s856, 16
        %s858 = scalar_lea.vmem [#allocation5], %s857
        // Predicated region
        $region65: #{tpu_custom_call.1} parent=55 // pred_check
          %p859 = pneg %p298
        $region66: #{tpu_custom_call.1} parent=55 // pred_check_branch
          %861 = sbr.rel (%p859) target = $region68
        $region67: #{tpu_custom_call.1} parent=55 // pred_region
          %863 = vsyncadd %s850, 0
          %s864 = smul.addr %s33, 2
          %s865 = sadd.s32 %s34, %s864
          %s866 = smul.addr %s865, 8
          %s867 = scalar_lea.hbm %s9, %s866
          %s869 = sshll.u32 %s853, 4
          %s870 = int_to_ptr.vmem [resolvable:$true] %s869
          %s871 = sshll.u32 %s867, 4
          %s872 = int_to_ptr.hbm [resolvable:$true] %s871
          %874 = dma.vmem_to_hbm [thread:$0]  %s870, 128, %s872, %s850
        $region68: #{tpu_custom_call.1} parent=55 // pred_fallthru
          _
        // Predicated region
        $region69: #{tpu_custom_call.1} parent=55 // pred_check
          %p875 = pneg %p328
        $region70: #{tpu_custom_call.1} parent=55 // pred_check_branch
          %877 = sbr.rel (%p875) target = $region72
        $region71: #{tpu_custom_call.1} parent=55 // pred_region
          %s878 = smul.u32 2, %s35
          %880 = vsyncadd %s855, 0
          %s881 = smul.addr %s878, 2
          %s882 = sadd.s32 %s34, %s881
          %s883 = smul.addr %s33, 8
          %s884 = sadd.s32 %s882, %s883
          %s885 = smul.addr %s884, 8
          %s886 = scalar_lea.hbm %s10, %s885
          %s887 = sshll.u32 %s858, 4
          %s888 = int_to_ptr.vmem [resolvable:$true] %s887
          %s889 = sshll.u32 %s886, 4
          %s890 = int_to_ptr.hbm [resolvable:$true] %s889
          %895 = dma.vmem_to_hbm [thread:$0]  %s888, 256, %s890, %s855, 128, 256, 8
        $region72: #{tpu_custom_call.1} parent=55 // pred_fallthru
          _
      $region56: #{tpu_custom_call.1} parent=5 // pred_fallthru
        _
      %p896 = scmp.le.s32.totalorder 2, %s23
      // Predicated region
      $region73: #{tpu_custom_call.1} parent=5 // pred_check
        %p897 = pneg %p896
      $region74: #{tpu_custom_call.1} parent=5 // pred_check_branch
        %899 = sbr.rel (%p897) target = $region76
      $region75: #{tpu_custom_call.1} parent=5 // pred_region
        %s900 = ssub.s32 %s23, 2
        // Predicated region
        $region77: #{tpu_custom_call.1} parent=75 // pred_check
          %p901 = pneg %p304
        $region78: #{tpu_custom_call.1} parent=75 // pred_check_branch
          %903 = sbr.rel (%p901) target = $region80
        $region79: #{tpu_custom_call.1} parent=75 // pred_region
          %s904 = sand.u32 %s289, 1
          %s905 = scalar_lea.sflag [#allocation4], %s904
          %s906 = sand.u32 %s289, 1
          %s907 = smul.addr %s906, 8
          %s908 = scalar_lea.vmem [#allocation3], %s907
          %910 = dma.done %s905, 128
        $region80: #{tpu_custom_call.1} parent=75 // pred_fallthru
          _
        // Predicated region
        $region81: #{tpu_custom_call.1} parent=75 // pred_check
          %p911 = pneg %p334
        $region82: #{tpu_custom_call.1} parent=75 // pred_check_branch
          %913 = sbr.rel (%p911) target = $region84
        $region83: #{tpu_custom_call.1} parent=75 // pred_region
          %s914 = sand.u32 %s319, 1
          %s915 = scalar_lea.sflag [#allocation6], %s914
          %s916 = sand.u32 %s319, 1
          %s917 = smul.addr %s916, 16
          %s918 = scalar_lea.vmem [#allocation5], %s917
          %920 = dma.done %s915, 256
        $region84: #{tpu_custom_call.1} parent=75 // pred_fallthru
          _
      $region76: #{tpu_custom_call.1} parent=5 // pred_fallthru
        _
    $region6: #{tpu_custom_call.1} parent=1 // loop_footer
      %s27 = sadd.s32 1, %s23
    $region7: #{tpu_custom_call.1} parent=1 // loop_footer_branch
      %22 = sbr.rel target = $region3
    $region8: #{tpu_custom_call.1} parent=1 // loop_exit
      _
    %921 = vsyncpa [#allocation4], 1
    %s922 = scalar_lea.sflag [#allocation4], 1
    %923 = vsyncpa %s922, 1
    %924 = vsyncpa [#allocation6], 1
    %s925 = scalar_lea.sflag [#allocation6], 1
    %926 = vsyncpa %s925, 1

</llo_original>
